<compile_context>
chip_gen: v7x
topology: tpu7x:2x2x1
jax: 0.10.0
libtpu: 0.0.40
codegen_flags: <defaults>
</compile_context>

<pallas_src>
import jax
import jax.numpy as jnp
from jax.experimental import pallas as pl
from jax.experimental.pallas import tpu as pltpu

_LANES = 128
_MIB = 1024 * 1024


def _round_up(x: int, m: int) -> int:
    return ((x + m - 1) // m) * m


def _cdiv(a: int, b: int) -> int:
    return (a + b - 1) // b


def _chip_generation() -> str:
    """Best-effort TPU generation detection (perf tuning only, never correctness)."""
    try:
        kind = jax.devices()[0].device_kind.lower()
    except Exception:
        return "unknown"
    if "v7" in kind or "7x" in kind:
        return "v7x"
    if "v6" in kind or "trillium" in kind:
        return "v6e"
    if "v5" in kind and ("lite" in kind or "v5e" in kind):
        return "v5e"
    if "v5" in kind:
        return "v5p"
    if "v4" in kind:
        return "v4"
    return "unknown"


def _scale_kernel(factor_ref, x_ref, o_ref):
    # factor_ref: (1,) f32 scalar in SMEM (scalar-prefetched); x_ref/o_ref: VMEM tiles.
    f = factor_ref[0]
    dt = o_ref.dtype
    o_ref[...] = x_ref[...].astype(dt) * f.astype(dt)


def _pick_tile_rows(rows: int, gran: int, target_rows: int,
                    min_steps: int, prefer_even: bool) -> int:
    """Pick a sublane-tile-aligned tile_rows giving >= min_steps pipeline steps
    (and preferably an even step count on dual-TensorCore parts)."""
    if rows <= gran:
        return rows  # truly tiny tensor: single full-array block
    base_steps = max(min_steps, _cdiv(rows, target_rows))

    def cand(steps: int) -> int:
        t = _round_up(_cdiv(rows, steps), gran)
        t = min(t, target_rows)          # never exceed the per-block VMEM budget
        if t >= rows:
            t = rows
        return t

    best = cand(base_steps)
    if prefer_even:
        for steps in range(base_steps, base_steps + 9):
            t = cand(steps)
            g = _cdiv(rows, t)
            if g % 2 == 0:
                best = t
                break
    return best


def _scale_body(x_body: jax.Array, factor_f32: jax.Array, out_dtype) -> jax.Array:
    """Kernel on a flat, 128-aligned body. Returns flat output of the same length."""
    n_body = x_body.shape[0]
    rows = n_body // _LANES

    in_size = jnp.dtype(x_body.dtype).itemsize
    out_size = jnp.dtype(out_dtype).itemsize
    max_size = max(in_size, out_size)
    # sublane granularity must satisfy both the (possibly packed) input and output dtypes
    gran = 8 * max(max(1, 4 // in_size), max(1, 4 // out_size))

    gen = _chip_generation()
    dual_core = gen in ("v7x", "v5p", "v4")
    block_bytes = 4 * _MIB if gen == "v7x" else 2 * _MIB
    min_steps = 8 if dual_core else 4
    # 4 MiB blocks * (in + out) * double-buffering <= 16 MiB; make the budget explicit.
    vmem_limit = 32 * _MIB if gen == "v7x" else None

    target_rows = max(gran, (block_bytes // (_LANES * max_size) // gran) * gran)
    tile_rows = _pick_tile_rows(rows, gran, target_rows, min_steps, dual_core)
    grid = (_cdiv(rows, tile_rows),)  # ragged last block handled by Pallas masking

    x2d = jnp.reshape(x_body, (rows, _LANES))  # free (row-major bitcast)

    cost = pl.CostEstimate(
        flops=n_body,
        transcendentals=0,
        bytes_accessed=n_body * (in_size + out_size),
    )

    out2d = pl.pallas_call(
        _scale_kernel,
        out_shape=jax.ShapeDtypeStruct((rows, _LANES), out_dtype),
        grid_spec=pltpu.PrefetchScalarGridSpec(
            num_scalar_prefetch=1,  # factor lands in SMEM before the grid runs
            grid=grid,
            in_specs=[pl.BlockSpec((tile_rows, _LANES), lambda i, f_ref: (i, 0))],
            out_specs=pl.BlockSpec((tile_rows, _LANES), lambda i, f_ref: (i, 0)),
        ),
        compiler_params=pltpu.CompilerParams(
            dimension_semantics=("parallel",),
            vmem_limit_bytes=vmem_limit,
        ),
        cost_estimate=cost,
    )(factor_f32, x2d)

    return jnp.reshape(out2d, (n_body,))


def single_scale(x: jax.Array, factor: jax.Array) -> jax.Array:
    """out = factor * x (PyTorch SingleScale.forward), computed in a Pallas TPU kernel."""
    orig_shape = x.shape
    factor_f32 = jnp.asarray(factor, dtype=jnp.float32).reshape((1,))
    # PyTorch promotion of a float32 Parameter times x (bf16 -> f32, int -> f32, f32 -> f32).
    out_dtype = jnp.promote_types(x.dtype, jnp.float32)

    n = x.size
    if n == 0:
        return jnp.zeros(orig_shape, out_dtype)

    x_flat = jnp.reshape(x, (n,))
    n_body = (n // _LANES) * _LANES

    if n_body == 0:
        # Degenerate (<128 elements): a kernel launch is pure overhead; one fused XLA op.
        return jnp.reshape(x_flat.astype(out_dtype) * factor_f32[0].astype(out_dtype),
                           orig_shape)

    if n_body == n:
        # Common aligned case: zero-copy reshape in and out of the kernel.
        return jnp.reshape(_scale_body(x_flat, factor_f32, out_dtype), orig_shape)

    # Ragged case: kernel on the 128-aligned body; the tiny (<128-elem) tail stays in XLA.
    body = jax.lax.slice(x_flat, (0,), (n_body,))
    tail = jax.lax.slice(x_flat, (n_body,), (n,))
    body_out = _scale_body(body, factor_f32, out_dtype)
    tail_out = tail.astype(out_dtype) * factor_f32[0].astype(out_dtype)
    return jnp.reshape(jnp.concatenate([body_out, tail_out]), orig_shape)


if __name__ == "__main__":
    key = jax.random.PRNGKey(0)

    # deterministic parameter init, matching torch.nn.Parameter(np.ones(1))
    factor = jnp.ones((1,), dtype=jnp.float32)

    # example input consistent with an NCHW conv-style tensor
    x = jax.random.normal(key, (2, 4, 16, 16), dtype=jnp.float32)

    out = jax.block_until_ready(single_scale(x, factor))
    assert out.shape == x.shape and out.dtype == jnp.float32
    assert jnp.allclose(out, factor[0] * x, atol=1e-6, rtol=1e-6)

    # non-trivial factor
    factor2 = jnp.array([2.5], dtype=jnp.float32)
    out2 = jax.block_until_ready(single_scale(x, factor2))
    assert jnp.allclose(out2, factor2[0] * x, atol=1e-6, rtol=1e-6)

    # 128-aligned, row count not a multiple of the tile: exercises cdiv grid + masked
    # final block and the >=4-step (even on dual-TC) pipeline split.
    x3 = jax.random.normal(jax.random.PRNGKey(1), (264 * 128,), dtype=jnp.float32)
    out3 = jax.block_until_ready(single_scale(x3, factor2))
    assert jnp.allclose(out3, 2.5 * x3, atol=1e-6, rtol=1e-6)

    # bf16 input: PyTorch promotion => float32 output (bf16-packed input tiles).
    x4 = jax.random.normal(jax.random.PRNGKey(2), (2, 4, 16, 16), dtype=jnp.bfloat16)
    out4 = jax.block_until_ready(single_scale(x4, factor2))
    ref4 = x4.astype(jnp.float32) * 2.5
    assert out4.dtype == jnp.float32
    assert jnp.allclose(out4, ref4, atol=1e-6, rtol=1e-6)

    # ragged element count (n % 128 != 0): aligned body in-kernel, tail in XLA.
    x5 = jax.random.normal(jax.random.PRNGKey(3), (5000,), dtype=jnp.float32)
    out5 = jax.block_until_ready(single_scale(x5, factor2))
    assert jnp.allclose(out5, 2.5 * x5, atol=1e-6, rtol=1e-6)

    # small ragged (body of 2 rows) and sub-128 degenerate fallback.
    x6 = jax.random.normal(jax.random.PRNGKey(4), (300,), dtype=jnp.float32)
    out6 = jax.block_until_ready(single_scale(x6, factor2))
    assert jnp.allclose(out6, 2.5 * x6, atol=1e-6, rtol=1e-6)
    x7 = jax.random.normal(jax.random.PRNGKey(5), (100,), dtype=jnp.float32)
    out7 = jax.block_until_ready(single_scale(x7, factor2))
    assert jnp.allclose(out7, 2.5 * x7, atol=1e-6, rtol=1e-6)

    print("KERNEL_OK")
</pallas_src>

<mosaic_0001>
module attributes {stable_mosaic.version = 11 : i64} {
  func.func @_scale_kernel(%arg0: i32, %arg1: memref<1xf32, #tpu.memory_space<smem>>, %arg2: memref<8x128xf32, #tpu.memory_space<vmem>>, %arg3: memref<8x128xf32, #tpu.memory_space<vmem>>) attributes {dimension_semantics = [#tpu.dimension_semantics<parallel>], iteration_bounds = array<i64: 2>, scalar_prefetch = 1 : i64, scratch_operands = 0 : i64, tpu.core_type = #tpu.core_type<tc>, window_params = [{transform_indices = @transform_0, window_bounds = array<i64: 8, 128>}, {transform_indices = @transform_1, window_bounds = array<i64: 8, 128>}]} {
    %c0 = arith.constant 0 : index
    %0 = memref.load %arg1[%c0] : memref<1xf32, #tpu.memory_space<smem>>
    %c0_0 = arith.constant 0 : index
    %c0_1 = arith.constant 0 : index
    %1 = vector.load %arg2[%c0_0, %c0_1] : memref<8x128xf32, #tpu.memory_space<vmem>>, vector<8x128xf32>
    %2 = vector.broadcast %0 : f32 to vector<8x128xf32>
    %3 = arith.mulf %1, %2 : vector<8x128xf32>
    %c0_2 = arith.constant 0 : index
    %c0_3 = arith.constant 0 : index
    %4 = vector.load %arg3[%c0_2, %c0_3] : memref<8x128xf32, #tpu.memory_space<vmem>>, vector<8x128xf32>
    tpu.vector_store %arg3[%c0_2, %c0_3], %3 {strides = array<i32>} : memref<8x128xf32, #tpu.memory_space<vmem>>, vector<8x128xf32>,
    return
  }
  func.func @transform_0(%arg0: i32, %arg1: memref<1xf32, #tpu.memory_space<smem>>) -> (i32, i32) {
    %c0_i32 = arith.constant 0 : i32
    %c0_i32_0 = arith.constant 0 : i32
    return %arg0, %c0_i32 : i32, i32
  }
  func.func @transform_1(%arg0: i32, %arg1: memref<1xf32, #tpu.memory_space<smem>>) -> (i32, i32) {
    %c0_i32 = arith.constant 0 : i32
    %c0_i32_0 = arith.constant 0 : i32
    return %arg0, %c0_i32 : i32, i32
  }
}

</mosaic_0001>

<llo_original>
// kernel: tpu_custom_call.1
$region0: #{tpu_custom_call.1}
  #allocation0 [shape = 'u32[]', space=smem, size = 0x4, offset = 0x4, fixed_abs, tag = 'smem constant byte address 0x4 - core index']
  #allocation1 [shape = 'u32[144,128]{1,0:T(1,128)}', space=vmem, size = 0x12000, scoped, tag = 'internal scratch']
  #allocation2 [shape = 's32[1]{0}', space=sflag, size = 0x4, scoped, tag = 'scoped memory for tpu_custom_call.1']
  #allocation3 [shape = 'f32[1]{0:T(128)S(6)}', space=smem, size = 0x200, scoped, tag = 'prefetched SMEM operand 0']
  %s0 = inlined_call_operand.<no memory space> [shape: f32[1], index: 0, kind: input, shape index: {}]
  %s1 = inlined_call_operand.hbm [shape: f32[16,128], index: 1, kind: input, shape index: {}]
  %s2 = inlined_call_operand.hbm [shape: f32[16,128], index: 2, kind: output, shape index: {}]
  %s3 = sld [smem:[#allocation0]]
  $region41: #{tpu_custom_call.1} parent=0
    _
  %s5 = ssub.s32 1, %s3
  %s6 = scalar_select 0, %s5, %s3
  %7 = sst [smem:[#allocation3]] %s0
  $region1: #{tpu_custom_call.1} parent=0
    #allocation4 [shape = 'u8[8192]{0}', space=vmem, size = 0x2000, scoped, tag = 'input window, operand 1']
    #allocation5 [shape = 's32[2]{0}', space=sflag, size = 0x8, scoped, tag = 'scoped memory for tpu_custom_call.1']
    #allocation6 [shape = 's32[2]{0}', space=sflag, size = 0x8, scoped, tag = 'scoped memory for tpu_custom_call.1']
    #allocation7 [shape = 'u8[8192]{0}', space=vmem, size = 0x2000, scoped, tag = 'output window, operand 0']
    %8 = vsyncpa [#allocation5], 0
    %s9 = scalar_lea.sflag [#allocation5], 1
    %10 = vsyncpa %s9, 0
    %11 = vsyncpa [#allocation6], 0
    %s12 = scalar_lea.sflag [#allocation6], 1
    %13 = vsyncpa %s12, 0
    loop: start=0, step=1, limit=4
    $region2: #{tpu_custom_call.1} parent=1 // loop_pre_header
      _
    $region3: #{tpu_custom_call.1} parent=1 // loop_header
      %s15 = sphi 0, %s19
      %p16 = scmp.ge.s32.totalorder %s15, 4
      %s25 = sphi 0, %s27
      %s28 = sphi 0, %s25
      %s29 = sphi 0, %s28
      %s45 = sphi 0, %s29
      %s51 = sphi 0, %s53
      %s54 = sphi 0, %s51
      %s55 = sphi 0, %s54
      %s71 = sphi 0, %s55
    $region4: #{tpu_custom_call.1} parent=1 // loop_header_branch
      %18 = sbr.rel (%p16) target = $region8
    $region5: #{tpu_custom_call.1} parent=1 // loop_body
      %s20 = ssub.s32 %s15, 1
      %s21 = ssub.s32 %s15, 2
      %s22 = sadd.s32 %s15, 1
      %s23 = ssub.s32 %s15, %s22
      %p24 = scmp.eq.s32.totalorder %s23, 0
      %s26 = sadd.s32 %s25, 1
      %s27 = scalar_select %p24, %s25, %s26
      %p30 = pneg %p24
      %p31 = scmp.eq.s32.totalorder %s15, 1
      %p32 = por %p30, %p31
      %p33 = scmp.ne.s32.totalorder %s25, %s28
      %p34 = scmp.eq.s32.totalorder %s15, 0
      %p35 = por %p33, %p34
      %p36 = scmp.ne.s32.totalorder %s25, %s28
      %p37 = scmp.eq.s32.totalorder %s20, 1
      %p38 = por %p36, %p37
      %p39 = scmp.ne.s32.totalorder %s28, %s29
      %p40 = scmp.eq.s32.totalorder %s20, 0
      %p41 = por %p39, %p40
      %p42 = scmp.ne.s32.totalorder %s28, %s29
      %p43 = scmp.eq.s32.totalorder %s21, 1
      %p44 = por %p42, %p43
      %p46 = scmp.ne.s32.totalorder %s29, %s45
      %p47 = scmp.eq.s32.totalorder %s21, 0
      %p48 = por %p46, %p47
      %s49 = ssub.s32 %s15, %s22
      %p50 = scmp.eq.s32.totalorder %s49, 0
      %s52 = sadd.s32 %s51, 1
      %s53 = scalar_select %p50, %s51, %s52
      %p56 = pneg %p50
      %p57 = scmp.eq.s32.totalorder %s15, 1
      %p58 = por %p56, %p57
      %p59 = scmp.ne.s32.totalorder %s51, %s54
      %p60 = scmp.eq.s32.totalorder %s15, 0
      %p61 = por %p59, %p60
      %p62 = scmp.ne.s32.totalorder %s51, %s54
      %p63 = scmp.eq.s32.totalorder %s20, 1
      %p64 = por %p62, %p63
      %p65 = scmp.ne.s32.totalorder %s54, %s55
      %p66 = scmp.eq.s32.totalorder %s20, 0
      %p67 = por %p65, %p66
      %p68 = scmp.ne.s32.totalorder %s54, %s55
      %p69 = scmp.eq.s32.totalorder %s21, 1
      %p70 = por %p68, %p69
      %p72 = scmp.ne.s32.totalorder %s55, %s71
      %p73 = scmp.eq.s32.totalorder %s21, 0
      %p74 = por %p72, %p73
      %p75 = scmp.le.s32.totalorder 1, %s15
      %p76 = scmp.lt.s32.totalorder %s15, 3
      %p77 = pnand %p75, %p76
      %p78 = pneg %p77
      // Predicated region
      $region9: #{tpu_custom_call.1} parent=5 // pred_check
        _
      $region10: #{tpu_custom_call.1} parent=5 // pred_check_branch
        %80 = sbr.rel (%p77) target = $region12
      $region11: #{tpu_custom_call.1} parent=5 // pred_region
        %s81 = ssub.s32 %s15, 1
      $region12: #{tpu_custom_call.1} parent=5 // pred_fallthru
        _
      %p82 = scmp.lt.s32.totalorder %s15, 2
      // Predicated region
      $region13: #{tpu_custom_call.1} parent=5 // pred_check
        %p83 = pneg %p82
      $region14: #{tpu_custom_call.1} parent=5 // pred_check_branch
        %85 = sbr.rel (%p83) target = $region16
      $region15: #{tpu_custom_call.1} parent=5 // pred_region
        // Predicated region
        $region17: #{tpu_custom_call.1} parent=15 // pred_check
          %p86 = pneg %p35
        $region18: #{tpu_custom_call.1} parent=15 // pred_check_branch
          %88 = sbr.rel (%p86) target = $region20
        $region19: #{tpu_custom_call.1} parent=15 // pred_region
          %s89 = sand.u32 %s25, 1
          %s90 = scalar_lea.sflag [#allocation5], %s89
          %s91 = sand.u32 %s25, 1
          %s92 = smul.addr %s91, 8
          %s93 = scalar_lea.vmem [#allocation4], %s92
          %s95 = ssub.s32 128, 128
          %96 = vsyncadd %s90, %s95
          %s97 = smul.addr %s15, 128
          %s98 = scalar_lea.hbm %s1, %s97
          %s100 = sshll.u32 %s93, 4
          %s101 = int_to_ptr.vmem [resolvable:$true] %s100
          %103 = dma.hbm_to_vmem [thread:$0]  %s98, 128, %s101, %s90
        $region20: #{tpu_custom_call.1} parent=15 // pred_fallthru
          _
      $region16: #{tpu_custom_call.1} parent=5 // pred_fallthru
        _
      %p104 = scmp.le.s32.totalorder 1, %s15
      %p105 = scmp.lt.s32.totalorder %s15, 3
      %p106 = pnand %p104, %p105
      %p107 = pneg %p106
      // Predicated region
      $region21: #{tpu_custom_call.1} parent=5 // pred_check
        _
      $region22: #{tpu_custom_call.1} parent=5 // pred_check_branch
        %109 = sbr.rel (%p106) target = $region24
      $region23: #{tpu_custom_call.1} parent=5 // pred_region
        %s110 = ssub.s32 %s15, 1
        %s111 = sand.u32 %s28, 1
        %s112 = scalar_lea.sflag [#allocation5], %s111
        %s113 = sand.u32 %s28, 1
        %s114 = smul.addr %s113, 8
        %s115 = scalar_lea.vmem [#allocation4], %s114
        // Predicated region
        $region25: #{tpu_custom_call.1} parent=23 // pred_check
          %p116 = pneg %p41
        $region26: #{tpu_custom_call.1} parent=23 // pred_check_branch
          %118 = sbr.rel (%p116) target = $region28
        $region27: #{tpu_custom_call.1} parent=23 // pred_region
          %119 = dma.done %s112, 128
        $region28: #{tpu_custom_call.1} parent=23 // pred_fallthru
          _
        %s120 = sand.u32 %s28, 1
        %s121 = scalar_lea.sflag [#allocation5], %s120
        %s122 = sand.u32 %s28, 1
        %s123 = smul.addr %s122, 8
        %s124 = scalar_lea.vmem [#allocation4], %s123
        %p125 = pneg %p41
        %p126 = pneg %p38
        %p127 = pneg %p67
        %p128 = pneg %p64
        %s129 = sand.u32 %s54, 1
        %s130 = scalar_lea.sflag [#allocation6], %s129
        %s131 = sand.u32 %s54, 1
        %s132 = smul.addr %s131, 8
        %s133 = scalar_lea.vmem [#allocation7], %s132
        %s134 = sld [smem:[#allocation3]]
        %v135 = vld [vmem:[%s115] sm:$0xff]
        %v136 = vstv %s134
        %v137 = vmul.f32 %v135, %v136
        %138 = vst [vmem:[%s133] sm:$0xff] %v137
        %s139 = sand.u32 %s54, 1
        %s140 = scalar_lea.sflag [#allocation6], %s139
        %s141 = sand.u32 %s54, 1
        %s142 = smul.addr %s141, 8
        %s143 = scalar_lea.vmem [#allocation7], %s142
        // Predicated region
        $region29: #{tpu_custom_call.1} parent=23 // pred_check
          %p144 = pneg %p64
        $region30: #{tpu_custom_call.1} parent=23 // pred_check_branch
          %146 = sbr.rel (%p144) target = $region32
        $region31: #{tpu_custom_call.1} parent=23 // pred_region
          %s148 = ssub.s32 128, 128
          %149 = vsyncadd %s140, %s148
          %s150 = smul.addr %s20, 128
          %s151 = scalar_lea.hbm %s2, %s150
          %s153 = sshll.u32 %s143, 4
          %s154 = int_to_ptr.vmem [resolvable:$true] %s153
          %156 = dma.vmem_to_hbm [thread:$0]  %s154, 128, %s151, %s140
        $region32: #{tpu_custom_call.1} parent=23 // pred_fallthru
          _
      $region24: #{tpu_custom_call.1} parent=5 // pred_fallthru
        _
      %p157 = scmp.le.s32.totalorder 2, %s15
      // Predicated region
      $region33: #{tpu_custom_call.1} parent=5 // pred_check
        %p158 = pneg %p157
      $region34: #{tpu_custom_call.1} parent=5 // pred_check_branch
        %160 = sbr.rel (%p158) target = $region36
      $region35: #{tpu_custom_call.1} parent=5 // pred_region
        %s161 = ssub.s32 %s15, 2
        // Predicated region
        $region37: #{tpu_custom_call.1} parent=35 // pred_check
          %p162 = pneg %p70
        $region38: #{tpu_custom_call.1} parent=35 // pred_check_branch
          %164 = sbr.rel (%p162) target = $region40
        $region39: #{tpu_custom_call.1} parent=35 // pred_region
          %s165 = sand.u32 %s55, 1
          %s166 = scalar_lea.sflag [#allocation6], %s165
          %s167 = sand.u32 %s55, 1
          %s168 = smul.addr %s167, 8
          %s169 = scalar_lea.vmem [#allocation7], %s168
          %170 = dma.done %s166, 128
        $region40: #{tpu_custom_call.1} parent=35 // pred_fallthru
          _
      $region36: #{tpu_custom_call.1} parent=5 // pred_fallthru
        _
    $region6: #{tpu_custom_call.1} parent=1 // loop_footer
      %s19 = sadd.s32 1, %s15
    $region7: #{tpu_custom_call.1} parent=1 // loop_footer_branch
      %14 = sbr.rel target = $region3
    $region8: #{tpu_custom_call.1} parent=1 // loop_exit
      _
    %171 = vsyncpa [#allocation5], 1
    %s172 = scalar_lea.sflag [#allocation5], 1
    %173 = vsyncpa %s172, 1
    %174 = vsyncpa [#allocation6], 1
    %s175 = scalar_lea.sflag [#allocation6], 1
    %176 = vsyncpa %s175, 1

</llo_original>
